<compile_context>
chip_gen: v5e
topology: v5e:2x2
jax: 0.10.0
libtpu: 0.0.40
codegen_flags: <defaults>
</compile_context>

<pallas_src>
import jax
import jax.numpy as jnp
from jax.experimental import pallas as pl
from jax.experimental.pallas import tpu as pltpu


# --------------------------------------------------------------------------
# Small helpers
# --------------------------------------------------------------------------
def _round_up(x, m):
    return ((x + m - 1) // m) * m


def _cdiv(a, b):
    return (a + b - 1) // b


def _vmem_budget_bytes():
    """Per-core VMEM capacity minus headroom for compiler scratch/semaphores."""
    try:
        cap = int(pltpu.get_tpu_info().vmem_capacity_bytes)
    except Exception:
        cap = 64 << 20          # unknown chip: assume the smallest (v7x per-TC)
    return max(cap - (8 << 20), 16 << 20)


# --------------------------------------------------------------------------
# Kernels
# --------------------------------------------------------------------------
def _softmax_kernel(t_ref, w_ref):
    """W tile = softmax(trans tile, axis=0) -> bf16 MXU feed."""
    t = t_ref[...].astype(jnp.float32)
    m = jnp.max(t, axis=0, keepdims=True)
    e = jnp.exp(t - m)
    # approx reciprocal rides the EUP slot; its error is far below the bf16
    # rounding applied to W right after.
    w = e * pl.reciprocal(jnp.sum(e, axis=0, keepdims=True), approx=True)
    w_ref[...] = w.astype(w_ref.dtype)


def _softmax_wt_kernel(t_ref, w_ref, wt_ref):
    """Same, but also emits W.T in exact f32 (user-visible output)."""
    t = t_ref[...].astype(jnp.float32)
    m = jnp.max(t, axis=0, keepdims=True)
    e = jnp.exp(t - m)
    w = e / jnp.sum(e, axis=0, keepdims=True)        # exact divide: W.T parity
    w_ref[...] = w.astype(w_ref.dtype)               # bf16 feed for the matmul
    wt_ref[...] = jnp.transpose(w)                   # [tc, Din_pad], lane-dense


def _matmul_kernel(x_ref, w_ref, o_ref):
    """pred tile = x tile @ W (W resident in VMEM, bf16 MXU, f32 accumulate)."""
    x = x_ref[...].astype(jnp.bfloat16)   # no-op when x is already streamed bf16
    o_ref[...] = jnp.dot(
        x, w_ref[...], preferred_element_type=jnp.float32).astype(o_ref.dtype)


def _fused_kernel(t_ref, x_ref, o_ref):
    """Tiny-shape path: softmax + matmul in one launch."""
    t = t_ref[...].astype(jnp.float32)
    m = jnp.max(t, axis=0, keepdims=True)
    e = jnp.exp(t - m)
    w = e / jnp.sum(e, axis=0, keepdims=True)
    # TODO(synk): on v6e/v7x a precision=HIGHEST f32 dot is free here (mem-bound).
    o_ref[...] = jnp.dot(
        x_ref[...].astype(jnp.bfloat16), w.astype(jnp.bfloat16),
        preferred_element_type=jnp.float32).astype(o_ref.dtype)


def _fused_wt_kernel(t_ref, x_ref, o_ref, wt_ref):
    t = t_ref[...].astype(jnp.float32)
    m = jnp.max(t, axis=0, keepdims=True)
    e = jnp.exp(t - m)
    w = e / jnp.sum(e, axis=0, keepdims=True)
    o_ref[...] = jnp.dot(
        x_ref[...].astype(jnp.bfloat16), w.astype(jnp.bfloat16),
        preferred_element_type=jnp.float32).astype(o_ref.dtype)
    wt_ref[...] = jnp.transpose(w)


# --------------------------------------------------------------------------
# Row-tile sizing
# --------------------------------------------------------------------------
def _pick_tm(n, din_pad, dout_pad, x_item, out_item, vmem_budget, tm_target):
    if tm_target is None:
        tm_target = 512          # ~85% of measured HBM roofline for mem-bound tiles
    # VMEM: 2 x-tile buffers + 1 resident bf16 W buffer + 2 output tile buffers
    per_row = 2 * din_pad * x_item + 2 * dout_pad * out_item
    avail = int(vmem_budget * 0.9) - din_pad * dout_pad * 2
    tm_cap = max(avail // max(per_row, 1), 16)
    tm = min(tm_target, tm_cap)
    # Keep both v7x TensorCores fed: >= 2 row tiles whenever N is big enough.
    if n > 256 and tm >= n:
        tm = _cdiv(n, 2)
    tm = min(tm, max(n, 16))
    # Alignment: MXU-native 256 (v6e/v7x, also a 128-multiple for v5e) when big,
    # otherwise a multiple of 16 for bf16 sublane packing.
    if tm >= 256:
        tm = (tm // 256) * 256
    elif tm >= 128:
        tm = 128
    else:
        tm = _round_up(tm, 16)
    return tm


# --------------------------------------------------------------------------
# Wrapper
# --------------------------------------------------------------------------
def ra_translator_forward(x, trans, only_pred=True, *, tm=None, out_dtype=None):
    """Pallas implementation of RaTranslator.forward.

    Args:
        x:     [N, dim_input]  reference gene signature.
        trans: [dim_input, dim_output]  raw (pre-softmax) translation parameter.
        only_pred: if False, also return softmax(trans, axis=0).T.
        tm:    row-tile target for the N axis (auto-derived if None).
        out_dtype: dtype of pred (defaults to x.dtype; pass bfloat16 to halve
                   the writeback of this bandwidth-bound matmul).

    Returns:
        pred [N, dim_output], or (pred, W.T) when only_pred=False.
        Note: pred is computed with bf16 MXU inputs + f32 accumulation
        (~bf16-level error); W.T stays exact f32.
    """
    n, din = x.shape
    din_t, dout = trans.shape
    assert din == din_t, "trans first dim must match input feature dim"

    out_dtype = jnp.dtype(x.dtype if out_dtype is None else out_dtype)
    din_pad = _round_up(din, 128)     # contraction dim, (8,128)-tile aligned
    dout_pad = _round_up(dout, 128)   # lane-dense outputs (unmasked vst)
    vmem_budget = _vmem_budget_bytes()

    # ---- padded trans (shared by all paths) -------------------------------
    t_p = trans.astype(jnp.float32)
    if dout_pad != dout:
        # Extra columns are independent under a column-wise softmax: harmless.
        t_p = jnp.pad(t_p, ((0, 0), (0, dout_pad - dout)))
    if din_pad != din:
        # Extra rows get exp(-1e30 - m) == 0 weight, so real columns unchanged.
        t_p = jnp.pad(t_p, ((0, din_pad - din), (0, 0)), constant_values=-1e30)

    # =======================================================================
    # Tiny-shape regime: one fused softmax+matmul call (per-call overhead and
    # the W HBM round trip dominate at these sizes; 1-point grid => no cross-TC
    # concern).
    # =======================================================================
    if din_pad <= 512 and dout_pad <= 512 and n <= 512:
        n_pad = _round_up(max(n, 1), 8)
        x_p = x
        if n_pad != n or din_pad != din:
            x_p = jnp.pad(x, ((0, n_pad - n), (0, din_pad - din)))

        def full(shape):
            return pl.BlockSpec(shape, lambda: (0, 0))

        fused_vmem = min(
            max(int((4 * din_pad * dout_pad * 4
                     + n_pad * din_pad * 4
                     + n_pad * dout_pad * 4) * 1.5) + (2 << 20), 16 << 20),
            vmem_budget)
        fused_cost = pl.CostEstimate(
            flops=4 * din_pad * dout_pad + 2 * n_pad * din_pad * dout_pad,
            transcendentals=din_pad * dout_pad,
            bytes_accessed=(din_pad * dout_pad * 4 + n_pad * din_pad * 4
                            + n_pad * dout_pad * out_dtype.itemsize
                            + (dout_pad * din_pad * 4 if not only_pred else 0)))

        if only_pred:
            pred_pad = pl.pallas_call(
                _fused_kernel,
                out_shape=jax.ShapeDtypeStruct((n_pad, dout_pad), out_dtype),
                in_specs=[full((din_pad, dout_pad)), full((n_pad, din_pad))],
                out_specs=full((n_pad, dout_pad)),
                compiler_params=pltpu.CompilerParams(vmem_limit_bytes=fused_vmem),
                cost_estimate=fused_cost,
            )(t_p, x_p)
            return pred_pad[:n, :dout]

        pred_pad, wt = pl.pallas_call(
            _fused_wt_kernel,
            out_shape=(jax.ShapeDtypeStruct((n_pad, dout_pad), out_dtype),
                       jax.ShapeDtypeStruct((dout_pad, din_pad), jnp.float32)),
            in_specs=[full((din_pad, dout_pad)), full((n_pad, din_pad))],
            out_specs=(full((n_pad, dout_pad)), full((dout_pad, din_pad))),
            compiler_params=pltpu.CompilerParams(vmem_limit_bytes=fused_vmem),
            cost_estimate=fused_cost,
        )(t_p, x_p)
        return pred_pad[:n, :dout], wt[:dout, :din]

    # =======================================================================
    # General regime
    # =======================================================================
    # ---- kernel 1: column softmax, tiled over Dout ------------------------
    # per-column VMEM bytes: 2 f32 input bufs + 2 bf16 W bufs + ~3 f32 temps
    # (+ 2 f32 W.T bufs when emitting it).
    per_col = din_pad * (2 * 4 + 2 * 2 + 3 * 4 + (2 * 4 if not only_pred else 0))
    tc_cands = [c for c in range(128, min(dout_pad, 512) + 1, 128)
                if dout_pad % c == 0 and c * per_col <= int(vmem_budget * 0.85)]
    tc = max(tc_cands) if tc_cands else 128
    # TODO(synk): K-tiled two-pass column softmax for dim_input so large that a
    # 128-column block of trans alone overflows VMEM.
    sm_grid = (dout_pad // tc,)
    sm_vmem = min(max(int(tc * per_col * 1.25) + (2 << 20), 16 << 20), vmem_budget)
    sm_cost = pl.CostEstimate(
        flops=4 * din_pad * dout_pad,
        transcendentals=din_pad * dout_pad,
        bytes_accessed=din_pad * dout_pad * (4 + 2 + (4 if not only_pred else 0)))
    t_spec = pl.BlockSpec((din_pad, tc), lambda j: (0, j))
    w_spec = pl.BlockSpec((din_pad, tc), lambda j: (0, j))
    sm_params = pltpu.CompilerParams(dimension_semantics=("parallel",),
                                     vmem_limit_bytes=sm_vmem)

    if only_pred:
        w = pl.pallas_call(
            _softmax_kernel,
            out_shape=jax.ShapeDtypeStruct((din_pad, dout_pad), jnp.bfloat16),
            grid=sm_grid,
            in_specs=[t_spec],
            out_specs=w_spec,
            compiler_params=sm_params,
            cost_estimate=sm_cost,
        )(t_p)
        wt = None
    else:
        w, wt = pl.pallas_call(
            _softmax_wt_kernel,
            out_shape=(jax.ShapeDtypeStruct((din_pad, dout_pad), jnp.bfloat16),
                       jax.ShapeDtypeStruct((dout_pad, din_pad), jnp.float32)),
            grid=sm_grid,
            in_specs=[t_spec],
            out_specs=(w_spec, pl.BlockSpec((tc, din_pad), lambda j: (j, 0))),
            compiler_params=sm_params,
            cost_estimate=sm_cost,
        )(t_p)

    # ---- kernel 2: N-tiled matmul with resident W --------------------------
    # Stream x as bf16 whenever a pad copy is needed anyway (cast folds into
    # the pad: one fused HBM pass, halves the dominant x stream in the kernel).
    x_needs_col_pad = (din_pad != din)
    stream_item = 2 if (x_needs_col_pad or x.dtype == jnp.bfloat16) \
        else jnp.dtype(x.dtype).itemsize
    tm = _pick_tm(n, din_pad, dout_pad, stream_item, out_dtype.itemsize,
                  vmem_budget, tm)
    n_pad = _round_up(max(n, 1), tm)

    if x_needs_col_pad or n_pad != n:
        x_p = jnp.pad(x, ((0, n_pad - n), (0, din_pad - din))).astype(jnp.bfloat16)
    else:
        x_p = x   # no copy needed: stream native dtype, cast in-kernel

    grid = (n_pad // tm,)
    x_item = jnp.dtype(x_p.dtype).itemsize
    mm_vmem = (2 * tm * din_pad * x_item            # double-buffered x tiles
               + din_pad * dout_pad * 2             # single-buffered resident W
               + 2 * tm * dout_pad * out_dtype.itemsize)
    mm_vmem = min(max(int(mm_vmem * 1.25) + (2 << 20), 16 << 20), vmem_budget)
    mm_cost = pl.CostEstimate(
        flops=2 * n_pad * din_pad * dout_pad,
        transcendentals=0,
        bytes_accessed=(n_pad * din_pad * x_item + din_pad * dout_pad * 2
                        + n_pad * dout_pad * out_dtype.itemsize))

    def _run_matmul(single_buffer_w):
        w_kwargs = {"pipeline_mode": pl.Buffered(1)} if single_buffer_w else {}
        return pl.pallas_call(
            _matmul_kernel,
            out_shape=jax.ShapeDtypeStruct((n_pad, dout_pad), out_dtype),
            grid=grid,
            in_specs=[
                pl.BlockSpec((tm, din_pad), lambda i: (i, 0)),       # streamed rows
                pl.BlockSpec((din_pad, dout_pad), lambda i: (0, 0),  # resident W
                             **w_kwargs),
            ],
            out_specs=pl.BlockSpec((tm, dout_pad), lambda i: (i, 0)),
            compiler_params=pltpu.CompilerParams(
                dimension_semantics=("parallel",),   # shard row tiles across v7x TCs
                vmem_limit_bytes=mm_vmem),
            cost_estimate=mm_cost,
        )(x_p, w)

    try:
        # W's index_map is constant -> never refetched; one buffer is enough.
        pred_pad = _run_matmul(True)
    except Exception:
        # TODO(synk): drop fallback once pl.Buffered(1) is guaranteed everywhere.
        pred_pad = _run_matmul(False)

    pred = pred_pad[:n, :dout]
    if only_pred:
        return pred
    return pred, wt[:dout, :din]


# --------------------------------------------------------------------------
# Pure-JAX reference (mirrors the PyTorch module exactly)
# --------------------------------------------------------------------------
def _reference_forward(x, trans, only_pred=True):
    w = jax.nn.softmax(trans, axis=0)
    pred = x @ w
    if only_pred:
        return pred
    return pred, w.T


if __name__ == "__main__":
    key = jax.random.PRNGKey(0)
    k_x, k_t, k_x2, k_t2 = jax.random.split(key, 4)

    # ---- tiny regime (fused single-call path), module-consistent sizes ----
    N, DIM_INPUT, DIM_OUTPUT = 8, 32, 16
    x = jax.random.normal(k_x, (N, DIM_INPUT), dtype=jnp.float32)
    trans = jax.random.normal(k_t, (DIM_INPUT, DIM_OUTPUT), dtype=jnp.float32)

    pred, w_t = ra_translator_forward(x, trans, only_pred=False)
    pred = jax.block_until_ready(pred)
    w_t = jax.block_until_ready(w_t)
    pred_only = jax.block_until_ready(ra_translator_forward(x, trans, only_pred=True))

    ref_pred, ref_w_t = _reference_forward(x, trans, only_pred=False)
    assert pred.shape == (N, DIM_OUTPUT)
    assert pred_only.shape == (N, DIM_OUTPUT)
    assert w_t.shape == (DIM_OUTPUT, DIM_INPUT)
    # pred uses bf16 MXU inputs with f32 accumulation -> relaxed tolerance.
    assert jnp.allclose(pred, ref_pred, atol=3e-2, rtol=3e-2)
    assert jnp.allclose(pred_only, ref_pred, atol=3e-2, rtol=3e-2)
    # W.T stays exact f32 -> tight tolerance.
    assert jnp.allclose(w_t, ref_w_t, atol=1e-5, rtol=1e-5)

    # ---- general regime (column-tiled softmax + N-tiled matmul, bf16 x) ---
    N2, DIN2, DOUT2 = 1024, 300, 200
    x2 = jax.random.normal(k_x2, (N2, DIN2), dtype=jnp.float32)
    trans2 = jax.random.normal(k_t2, (DIN2, DOUT2), dtype=jnp.float32)

    pred2, w_t2 = ra_translator_forward(x2, trans2, only_pred=False)
    pred2 = jax.block_until_ready(pred2)
    w_t2 = jax.block_until_ready(w_t2)
    pred2_only = jax.block_until_ready(
        ra_translator_forward(x2, trans2, only_pred=True))

    ref_pred2, ref_w_t2 = _reference_forward(x2, trans2, only_pred=False)
    assert pred2.shape == (N2, DOUT2)
    assert pred2_only.shape == (N2, DOUT2)
    assert w_t2.shape == (DOUT2, DIN2)
    assert jnp.allclose(pred2, ref_pred2, atol=3e-2, rtol=3e-2)
    assert jnp.allclose(pred2_only, ref_pred2, atol=3e-2, rtol=3e-2)
    assert jnp.allclose(w_t2, ref_w_t2, atol=1e-5, rtol=1e-5)

    print("KERNEL_OK")
</pallas_src>

<mosaic_0001>
module attributes {stable_mosaic.version = 11 : i64} {
  func.func @_fused_wt_kernel(%arg0: memref<128x128xf32, #tpu.memory_space<vmem>>, %arg1: memref<8x128xf32, #tpu.memory_space<vmem>>, %arg2: memref<8x128xf32, #tpu.memory_space<vmem>>, %arg3: memref<128x128xf32, #tpu.memory_space<vmem>>) attributes {dimension_semantics = [], scalar_prefetch = 0 : i64, scratch_operands = 0 : i64, tpu.core_type = #tpu.core_type<tc>} {
    %c0 = arith.constant 0 : index
    %c0_0 = arith.constant 0 : index
    %0 = vector.load %arg0[%c0, %c0_0] : memref<128x128xf32, #tpu.memory_space<vmem>>, vector<128x128xf32>
    %cst = arith.constant dense<0xFF800000> : vector<128xf32>
    %1 = vector.multi_reduction <maximumf>, %0, %cst [0] : vector<128x128xf32> to vector<128xf32>
    %2 = vector.shape_cast %1 : vector<128xf32> to vector<1x128xf32>
    %3 = vector.broadcast %2 : vector<1x128xf32> to vector<128x128xf32>
    %4 = arith.subf %0, %3 : vector<128x128xf32>
    %5 = math.exp %4 : vector<128x128xf32>
    %cst_1 = arith.constant dense<0.000000e+00> : vector<128xf32>
    %6 = vector.multi_reduction <add>, %5, %cst_1 [0] : vector<128x128xf32> to vector<128xf32>
    %7 = vector.shape_cast %6 : vector<128xf32> to vector<1x128xf32>
    %8 = vector.broadcast %7 : vector<1x128xf32> to vector<128x128xf32>
    %9 = arith.divf %5, %8 : vector<128x128xf32>
    %c0_2 = arith.constant 0 : index
    %c0_3 = arith.constant 0 : index
    %10 = vector.load %arg1[%c0_2, %c0_3] : memref<8x128xf32, #tpu.memory_space<vmem>>, vector<8x128xf32>
    %11 = arith.truncf %10 : vector<8x128xf32> to vector<8x128xbf16>
    %12 = arith.truncf %9 : vector<128x128xf32> to vector<128x128xbf16>
    %cst_4 = arith.constant dense<0.000000e+00> : vector<8x128xf32>
    %13 = tpu.matmul %11, %12, %cst_4 {dimension_numbers = #tpu.dot_dimension_numbers<[1], [0], [0], [1], [0, 0, 1, 1], [], []>} : vector<8x128xbf16>, vector<128x128xbf16>, vector<8x128xf32> -> vector<8x128xf32>
    %c0_5 = arith.constant 0 : index
    %c0_6 = arith.constant 0 : index
    %14 = vector.load %arg2[%c0_5, %c0_6] : memref<8x128xf32, #tpu.memory_space<vmem>>, vector<8x128xf32>
    tpu.vector_store %arg2[%c0_5, %c0_6], %13 {strides = array<i32>} : memref<8x128xf32, #tpu.memory_space<vmem>>, vector<8x128xf32>,
    %15 = tpu.transpose %9, [1, 0] : vector<128x128xf32> -> vector<128x128xf32>
    %c0_7 = arith.constant 0 : index
    %c0_8 = arith.constant 0 : index
    %16 = vector.load %arg3[%c0_7, %c0_8] : memref<128x128xf32, #tpu.memory_space<vmem>>, vector<128x128xf32>
    tpu.vector_store %arg3[%c0_7, %c0_8], %15 {strides = array<i32>} : memref<128x128xf32, #tpu.memory_space<vmem>>, vector<128x128xf32>,
    return
  }
}

</mosaic_0001>

<llo_original>
// kernel: tpu_custom_call.1
$region0: #{tpu_custom_call.1}
  #allocation0 [shape = 'u32[]', space=smem, size = 0x4, offset = 0x4, fixed_abs, tag = 'smem constant byte address 0x4 - core index']
  #allocation1 [shape = 'u32[72,128]{1,0:T(1,128)}', space=vmem, size = 0x9000, scoped, tag = 'internal scratch']
  %s0 = inlined_call_operand.hbm [shape: f32[128,128], index: 0, kind: input, shape index: {}]
  %s1 = inlined_call_operand.hbm [shape: f32[8,128], index: 1, kind: input, shape index: {}]
  %s2 = inlined_call_operand.hbm [shape: f32[8,128], index: 2, kind: output, shape index: {0}]
  %s3 = inlined_call_operand.hbm [shape: f32[128,128], index: 3, kind: output, shape index: {1}]
  %4 = xla_tuple %s2, %s3
  %s5 = sld [smem:[#allocation0]]
  $region34: #{tpu_custom_call.1} parent=0
    _
  %s7 = ssub.s32 1, %s5
  %s8 = scalar_select 0, %s7, %s5
  $region1: #{tpu_custom_call.1} parent=0
    #allocation2 [shape = 'u8[65536]{0}', space=vmem, size = 0x10000, scoped, tag = 'input window, operand 0, single buffered']
    #allocation3 [shape = 's32[1]{0}', space=sflag, size = 0x4, scoped, tag = 'scoped memory for tpu_custom_call.1']
    #allocation4 [shape = 's32[1]{0}', space=sflag, size = 0x4, scoped, tag = 'scoped memory for tpu_custom_call.1']
    #allocation5 [shape = 'u8[4096]{0}', space=vmem, size = 0x1000, scoped, tag = 'input window, operand 1, single buffered']
    #allocation6 [shape = 's32[1]{0}', space=sflag, size = 0x4, scoped, tag = 'scoped memory for tpu_custom_call.1']
    #allocation7 [shape = 'u8[4096]{0}', space=vmem, size = 0x1000, scoped, tag = 'output window, operand 0, single buffered']
    #allocation8 [shape = 'u8[65536]{0}', space=vmem, size = 0x10000, scoped, tag = 'output window, operand 1, single buffered']
    #allocation9 [shape = 's32[1]{0}', space=sflag, size = 0x4, scoped, tag = 'scoped memory for tpu_custom_call.1']
    %9 = vsyncpa [#allocation3], 0
    %10 = vsyncpa [#allocation6], 0
    %11 = vsyncpa [#allocation4], 0
    %12 = vsyncpa [#allocation9], 0
    // Predicated region
    $region2: #{tpu_custom_call.1} parent=1 // pred_check
      _
    $region3: #{tpu_custom_call.1} parent=1 // pred_check_branch
      %14 = sbr.rel (0) target = $region5
    $region4: #{tpu_custom_call.1} parent=1 // pred_region
      %16 = vsyncadd [#allocation3], 0
      %s17 = sshll.u32 %s0, 4
      %s18 = int_to_ptr.hbm [resolvable:$true] %s17
      %s19 = sshll.u32 [#allocation2], 4
      %s20 = int_to_ptr.vmem [resolvable:$true] %s19
      %25 = dma.hbm_to_vmem [thread:$0]  %s18, 2048, %s20, [#allocation3], 128, 128, 8
    $region5: #{tpu_custom_call.1} parent=1 // pred_fallthru
      _
    // Predicated region
    $region6: #{tpu_custom_call.1} parent=1 // pred_check
      _
    $region7: #{tpu_custom_call.1} parent=1 // pred_check_branch
      %27 = sbr.rel (0) target = $region9
    $region8: #{tpu_custom_call.1} parent=1 // pred_region
      %29 = vsyncadd [#allocation6], 0
      %s31 = sshll.u32 %s1, 4
      %s32 = int_to_ptr.hbm [resolvable:$true] %s31
      %s33 = sshll.u32 [#allocation5], 4
      %s34 = int_to_ptr.vmem [resolvable:$true] %s33
      %36 = dma.hbm_to_vmem [thread:$0]  %s32, 128, %s34, [#allocation6]
    $region9: #{tpu_custom_call.1} parent=1 // pred_fallthru
      _
    // Predicated region
    $region10: #{tpu_custom_call.1} parent=1 // pred_check
      _
    $region11: #{tpu_custom_call.1} parent=1 // pred_check_branch
      %38 = sbr.rel (0) target = $region13
    $region12: #{tpu_custom_call.1} parent=1 // pred_region
      %40 = dma.done [#allocation3], 2048
    $region13: #{tpu_custom_call.1} parent=1 // pred_fallthru
      _
    // Predicated region
    $region14: #{tpu_custom_call.1} parent=1 // pred_check
      _
    $region15: #{tpu_custom_call.1} parent=1 // pred_check_branch
      %42 = sbr.rel (0) target = $region17
    $region16: #{tpu_custom_call.1} parent=1 // pred_region
      %44 = dma.done [#allocation6], 128
    $region17: #{tpu_custom_call.1} parent=1 // pred_fallthru
      _
    %v45 = vld [vmem:[#allocation2] sm:$0xff]
    %v46 = vld [vmem:[#allocation2 + $0x8] sm:$0xff]
    %v47 = vld [vmem:[#allocation2 + $0x10] sm:$0xff]
    %v48 = vld [vmem:[#allocation2 + $0x18] sm:$0xff]
    %v49 = vld [vmem:[#allocation2 + $0x20] sm:$0xff]
    %v50 = vld [vmem:[#allocation2 + $0x28] sm:$0xff]
    %v51 = vld [vmem:[#allocation2 + $0x30] sm:$0xff]
    %v52 = vld [vmem:[#allocation2 + $0x38] sm:$0xff]
    %v53 = vld [vmem:[#allocation2 + $0x40] sm:$0xff]
    %v54 = vld [vmem:[#allocation2 + $0x48] sm:$0xff]
    %v55 = vld [vmem:[#allocation2 + $0x50] sm:$0xff]
    %v56 = vld [vmem:[#allocation2 + $0x58] sm:$0xff]
    %v57 = vld [vmem:[#allocation2 + $0x60] sm:$0xff]
    %v58 = vld [vmem:[#allocation2 + $0x68] sm:$0xff]
    %v59 = vld [vmem:[#allocation2 + $0x70] sm:$0xff]
    %v60 = vld [vmem:[#allocation2 + $0x78] sm:$0xff]
    %v61 = vmax.f32 %v45, %v49
    %v62 = vmax.f32 %v46, %v50
    %v63 = vmax.f32 %v47, %v51
    %v64 = vmax.f32 %v48, %v52
    %v65 = vmax.f32 %v61, %v53
    %v66 = vmax.f32 %v62, %v54
    %v67 = vmax.f32 %v63, %v55
    %v68 = vmax.f32 %v64, %v56
    %v69 = vmax.f32 %v65, %v57
    %v70 = vmax.f32 %v66, %v58
    %v71 = vmax.f32 %v67, %v59
    %v72 = vmax.f32 %v68, %v60
    %v73 = vmax.f32 %v69, %v70
    %v74 = vmax.f32 %v71, %v72
    %v75 = vmax.f32 %v73, %v74
    %v76 = vrot.slane %v75, 4
    %v77 = vmax.f32 %v75, %v76
    %v78 = vrot.slane %v77, 2
    %v79 = vmax.f32 %v77, %v78
    %v80 = vrot.slane %v79, 1
    %v81 = vmax.f32 %v79, %v80
    %v82 = vsub.f32 %v45, %v81
    %v83 = vsub.f32 %v46, %v81
    %v84 = vsub.f32 %v47, %v81
    %v85 = vsub.f32 %v48, %v81
    %v86 = vsub.f32 %v49, %v81
    %v87 = vsub.f32 %v50, %v81
    %v88 = vsub.f32 %v51, %v81
    %v89 = vsub.f32 %v52, %v81
    %v90 = vsub.f32 %v53, %v81
    %v91 = vsub.f32 %v54, %v81
    %v92 = vsub.f32 %v55, %v81
    %v93 = vsub.f32 %v56, %v81
    %v94 = vsub.f32 %v57, %v81
    %v95 = vsub.f32 %v58, %v81
    %v96 = vsub.f32 %v59, %v81
    %v97 = vsub.f32 %v60, %v81
    %v98 = vmul.f32 %v82, 1.442695
    %v99 = vpow.pop %v98
    %v100 = vmul.f32 %v83, 1.442695
    %v101 = vpow.pop %v100
    %v102 = vmul.f32 %v84, 1.442695
    %v103 = vpow.pop %v102
    %v104 = vmul.f32 %v85, 1.442695
    %v105 = vpow.pop %v104
    %v106 = vmul.f32 %v86, 1.442695
    %v107 = vpow.pop %v106
    %v108 = vmul.f32 %v87, 1.442695
    %v109 = vpow.pop %v108
    %v110 = vmul.f32 %v88, 1.442695
    %v111 = vpow.pop %v110
    %v112 = vmul.f32 %v89, 1.442695
    %v113 = vpow.pop %v112
    %v114 = vmul.f32 %v90, 1.442695
    %v115 = vpow.pop %v114
    %v116 = vmul.f32 %v91, 1.442695
    %v117 = vpow.pop %v116
    %v118 = vmul.f32 %v92, 1.442695
    %v119 = vpow.pop %v118
    %v120 = vmul.f32 %v93, 1.442695
    %v121 = vpow.pop %v120
    %v122 = vmul.f32 %v94, 1.442695
    %v123 = vpow.pop %v122
    %v124 = vmul.f32 %v95, 1.442695
    %v125 = vpow.pop %v124
    %v126 = vmul.f32 %v96, 1.442695
    %v127 = vpow.pop %v126
    %v128 = vmul.f32 %v97, 1.442695
    %v129 = vpow.pop %v128
    %v130 = vadd.f32 %v99, %v101
    %v131 = vadd.f32 %v130, %v103
    %v132 = vadd.f32 %v131, %v105
    %v133 = vadd.f32 %v132, %v107
    %v134 = vadd.f32 %v133, %v109
    %v135 = vadd.f32 %v134, %v111
    %v136 = vadd.f32 %v135, %v113
    %v137 = vadd.f32 %v136, %v115
    %v138 = vadd.f32 %v137, %v117
    %v139 = vadd.f32 %v138, %v119
    %v140 = vadd.f32 %v139, %v121
    %v141 = vadd.f32 %v140, %v123
    %v142 = vadd.f32 %v141, %v125
    %v143 = vadd.f32 %v142, %v127
    %v144 = vadd.f32 %v143, %v129
    %v145 = vrot.slane %v144, 4
    %v146 = vadd.f32 %v144, %v145
    %v147 = vrot.slane %v146, 2
    %v148 = vadd.f32 %v146, %v147
    %v149 = vrot.slane %v148, 1
    %v150 = vadd.f32 %v148, %v149
    %v151 = vrcp.pop %v150
    %v152 = vmul.f32 %v150, %v151
    %v153 = vsub.f32 1.0, %v152
    %v154 = vmul.f32 %v151, %v153
    %v155 = vadd.f32 %v151, %v154
    %vm156 = vweird.f32 %v150
    %vm157 = vweird.f32 %v151
    %vm158 = vmor %vm156, %vm157
    %v159 = vsel %vm158, %v151, %v155
    %v160 = vand.u32 2147483647, %v150
    %vm161 = vcmp.eq.f32.partialorder %v160, 8.507059e+37
    %v162 = vand.u32 %v150, 2147483648
    %v163 = vor.u32 1.1754944e-38, %v162
    %v164 = vsel %vm161, %v163, %v159
    %v165 = vmul.f32 %v99, %v164
    %v166 = vmul.f32 %v101, %v164
    %v167 = vmul.f32 %v103, %v164
    %v168 = vmul.f32 %v105, %v164
    %v169 = vmul.f32 %v107, %v164
    %v170 = vmul.f32 %v109, %v164
    %v171 = vmul.f32 %v111, %v164
    %v172 = vmul.f32 %v113, %v164
    %v173 = vmul.f32 %v115, %v164
    %v174 = vmul.f32 %v117, %v164
    %v175 = vmul.f32 %v119, %v164
    %v176 = vmul.f32 %v121, %v164
    %v177 = vmul.f32 %v123, %v164
    %v178 = vmul.f32 %v125, %v164
    %v179 = vmul.f32 %v127, %v164
    %v180 = vmul.f32 %v129, %v164
    %v181 = vld [vmem:[#allocation5] sm:$0xff]
    %v182 = vpack.c.bf16 %v181, %v181
    %v183 = vpack.c.bf16 %v166, %v165
    %v184 = vpack.c.bf16 %v168, %v167
    %v185 = vpack.c.bf16 %v170, %v169
    %v186 = vpack.c.bf16 %v172, %v171
    %v187 = vpack.c.bf16 %v174, %v173
    %v188 = vpack.c.bf16 %v176, %v175
    %v189 = vpack.c.bf16 %v178, %v177
    %v190 = vpack.c.bf16 %v180, %v179
    %191 = vmatpush.bf16.msra.mxu0 %v190
    %192 = vmatpush.bf16.msra.mxu0 %v189
    %193 = vmatpush.bf16.msra.mxu0 %v188
    %194 = vmatpush.bf16.msra.mxu0 %v187
    %195 = vmatpush.bf16.msra.mxu0 %v186
    %196 = vmatpush.bf16.msra.mxu0 %v185
    %197 = vmatpush.bf16.msra.mxu0 %v184
    %198 = vmatpush.bf16.msra.mxu0 %v183
    %199 = vmatmul.bf16.gmra.mxu0 %v182
    %v200 = vpop.f32.mrf.mxu0
    %v201 = vadd.f32 0.0, %v200
    %v202 = vpop.f32.mrf.mxu0
    %203 = vdwg.mxu0
    %204 = vst [vmem:[#allocation7] sm:$0xff] %v201
    %205 = vxpose.xlu0.b32.start [1/16] %v165, 128
    %206 = vxpose.xlu0.b32.cont [2/16] %v166, 128
    %207 = vxpose.xlu0.b32.cont [3/16] %v167, 128
    %208 = vxpose.xlu0.b32.cont [4/16] %v168, 128
    %209 = vxpose.xlu0.b32.cont [5/16] %v169, 128
    %210 = vxpose.xlu0.b32.cont [6/16] %v170, 128
    %211 = vxpose.xlu0.b32.cont [7/16] %v171, 128
    %212 = vxpose.xlu0.b32.cont [8/16] %v172, 128
    %213 = vxpose.xlu0.b32.cont [9/16] %v173, 128
    %214 = vxpose.xlu0.b32.cont [10/16] %v174, 128
    %215 = vxpose.xlu0.b32.cont [11/16] %v175, 128
    %216 = vxpose.xlu0.b32.cont [12/16] %v176, 128
    %217 = vxpose.xlu0.b32.cont [13/16] %v177, 128
    %218 = vxpose.xlu0.b32.cont [14/16] %v178, 128
    %219 = vxpose.xlu0.b32.cont [15/16] %v179, 128
    %220 = vxpose.xlu0.b32.end [16/16] %v180, 128
    %v221 = vpop.trf.xlu0
    %v222 = vpop.trf.xlu0
    %v223 = vpop.trf.xlu0
    %v224 = vpop.trf.xlu0
    %v225 = vpop.trf.xlu0
    %v226 = vpop.trf.xlu0
    %v227 = vpop.trf.xlu0
    %v228 = vpop.trf.xlu0
    %v229 = vpop.trf.xlu0
    %v230 = vpop.trf.xlu0
    %v231 = vpop.trf.xlu0
    %v232 = vpop.trf.xlu0
    %v233 = vpop.trf.xlu0
    %v234 = vpop.trf.xlu0
    %v235 = vpop.trf.xlu0
    %v236 = vpop.trf.xlu0
    %237 = vst [vmem:[#allocation8] sm:$0xff] %v221
    %238 = vst [vmem:[#allocation8 + $0x8] sm:$0xff] %v222
    %239 = vst [vmem:[#allocation8 + $0x10] sm:$0xff] %v223
    %240 = vst [vmem:[#allocation8 + $0x18] sm:$0xff] %v224
    %241 = vst [vmem:[#allocation8 + $0x20] sm:$0xff] %v225
    %242 = vst [vmem:[#allocation8 + $0x28] sm:$0xff] %v226
    %243 = vst [vmem:[#allocation8 + $0x30] sm:$0xff] %v227
    %244 = vst [vmem:[#allocation8 + $0x38] sm:$0xff] %v228
    %245 = vst [vmem:[#allocation8 + $0x40] sm:$0xff] %v229
    %246 = vst [vmem:[#allocation8 + $0x48] sm:$0xff] %v230
    %247 = vst [vmem:[#allocation8 + $0x50] sm:$0xff] %v231
    %248 = vst [vmem:[#allocation8 + $0x58] sm:$0xff] %v232
    %249 = vst [vmem:[#allocation8 + $0x60] sm:$0xff] %v233
    %250 = vst [vmem:[#allocation8 + $0x68] sm:$0xff] %v234
    %251 = vst [vmem:[#allocation8 + $0x70] sm:$0xff] %v235
    %252 = vst [vmem:[#allocation8 + $0x78] sm:$0xff] %v236
    // Predicated region
    $region18: #{tpu_custom_call.1} parent=1 // pred_check
      _
    $region19: #{tpu_custom_call.1} parent=1 // pred_check_branch
      %254 = sbr.rel (0) target = $region21
    $region20: #{tpu_custom_call.1} parent=1 // pred_region
      %256 = vsyncadd [#allocation4], 0
      %s258 = sshll.u32 [#allocation7], 4
      %s259 = int_to_ptr.vmem [resolvable:$true] %s258
      %s260 = sshll.u32 %s2, 4
      %s261 = int_to_ptr.hbm [resolvable:$true] %s260
      %263 = dma.vmem_to_hbm [thread:$0]  %s259, 128, %s261, [#allocation4]
    $region21: #{tpu_custom_call.1} parent=1 // pred_fallthru
      _
    // Predicated region
    $region22: #{tpu_custom_call.1} parent=1 // pred_check
      _
    $region23: #{tpu_custom_call.1} parent=1 // pred_check_branch
      %265 = sbr.rel (0) target = $region25
    $region24: #{tpu_custom_call.1} parent=1 // pred_region
      %267 = vsyncadd [#allocation9], 0
      %s268 = sshll.u32 [#allocation8], 4
      %s269 = int_to_ptr.vmem [resolvable:$true] %s268
      %s270 = sshll.u32 %s3, 4
      %s271 = int_to_ptr.hbm [resolvable:$true] %s270
      %276 = dma.vmem_to_hbm [thread:$0]  %s269, 2048, %s271, [#allocation9], 128, 128, 8
    $region25: #{tpu_custom_call.1} parent=1 // pred_fallthru
      _
    // Predicated region
    $region26: #{tpu_custom_call.1} parent=1 // pred_check
      _
    $region27: #{tpu_custom_call.1} parent=1 // pred_check_branch
      %278 = sbr.rel (0) target = $region29
    $region28: #{tpu_custom_call.1} parent=1 // pred_region
      %280 = dma.done [#allocation4], 128
    $region29: #{tpu_custom_call.1} parent=1 // pred_fallthru
      _
    // Predicated region
    $region30: #{tpu_custom_call.1} parent=1 // pred_check
      _
    $region31: #{tpu_custom_call.1} parent=1 // pred_check_branch
      %282 = sbr.rel (0) target = $region33
    $region32: #{tpu_custom_call.1} parent=1 // pred_region
      %284 = dma.done [#allocation9], 2048
    $region33: #{tpu_custom_call.1} parent=1 // pred_fallthru
      _
    %285 = vsyncpa [#allocation3], 1
    %286 = vsyncpa [#allocation6], 1
    %287 = vsyncpa [#allocation4], 1
    %288 = vsyncpa [#allocation9], 1

</llo_original>
